<compile_context>
chip_gen: v5e
topology: v5e:2x2
jax: 0.10.0
libtpu: 0.0.40
codegen_flags: <defaults>
</compile_context>

<pallas_src>
import jax
import jax.numpy as jnp
import numpy as np
from jax.experimental import pallas as pl
from jax.experimental.pallas import tpu as pltpu


def duq_kernel(d_ref, w2_ref, z_ref, g_ref, scale_ref, o_ref):
    # One lane-dense MXU matmul: [B, F] @ [F, F*C] -> [B, F*C]
    dw = jnp.dot(d_ref[...], w2_ref[...], preferred_element_type=jnp.float32)
    diff = dw - z_ref[...]                      # [B, F*C] - [1, F*C] broadcast
    sq = diff * diff                            # elementwise on full vregs
    # Sum over m via selector matmul: [B, F*C] @ [F*C, C] -> [B, C]
    ssum = jnp.dot(sq, g_ref[...], preferred_element_type=jnp.float32)
    o_ref[...] = (scale_ref[0] * ssum).astype(o_ref.dtype)


def gauss_duq_forward(D, W, m_buf, N_buf, gamma):
    """D: [B, F] f32, W: [F, C, F] f32, m_buf: [F, C], N_buf: [C], gamma: scalar."""
    B, F = D.shape
    Fm, C, Fj = W.shape
    assert F == Fj == Fm

    # ---- layout prep (cheap, done once per call in XLA) ----
    # W2[j, m*C + n] = W[m, n, j]
    W2 = jnp.transpose(W, (2, 0, 1)).reshape(Fj, Fm * C)
    # Z_flat[0, m*C + n] = (m_buf / N)[m, n]
    Z_flat = (m_buf / N_buf[None, :]).reshape(1, Fm * C)
    # Selector that sums the squared residuals over m: G[m*C+n, n'] = (n == n')
    G = jnp.tile(jnp.eye(C, dtype=jnp.float32), (Fm, 1))            # [F*C, C]
    # Fold -gamma and 1/F into a single scalar (SMEM)
    scale = jnp.asarray([-gamma / Fm], jnp.float32)

    return pl.pallas_call(
        duq_kernel,
        out_shape=jax.ShapeDtypeStruct((B, C), jnp.float32),
        in_specs=[
            pl.BlockSpec(memory_space=pltpu.MemorySpace.VMEM),   # D      [B, F]
            pl.BlockSpec(memory_space=pltpu.MemorySpace.VMEM),   # W2     [F, F*C]
            pl.BlockSpec(memory_space=pltpu.MemorySpace.VMEM),   # Z_flat [1, F*C]
            pl.BlockSpec(memory_space=pltpu.MemorySpace.VMEM),   # G      [F*C, C]
            pl.BlockSpec(memory_space=pltpu.MemorySpace.SMEM),   # scale  [1]
        ],
        out_specs=pl.BlockSpec(memory_space=pltpu.MemorySpace.VMEM),
    )(D, W2, Z_flat, G, scale)


def ref_forward(D, W, m_buf, N_buf, gamma):
    DW = jnp.einsum('ij,mnj->imn', D, W)
    Z = m_buf / N_buf[None, :]
    out = DW - Z[None, :, :]
    return -gamma * jnp.mean(out ** 2, axis=1)


if __name__ == "__main__":
    key = jax.random.PRNGKey(0)
    k_d, k_w, k_m = jax.random.split(key, 3)

    batch = 8
    in_features = 32
    out_features = 16
    gamma_val = 0.1
    alpha = 0.999  # unused in forward
    # TODO(synk): update_centroids / conf (EMA buffer updates, exp) are not part
    # of forward and are not kernelized here.

    # --- deterministic parameter / buffer init (mirrors __init__ shapes) ---
    N_buf = jnp.ones((out_features,), jnp.float32) * 10.0
    m_init = 0.05 * jax.random.normal(k_m, (in_features, out_features), jnp.float32)
    m_buf = m_init * N_buf  # broadcast over last dim, as in torch

    # W: kaiming_normal_(nonlinearity='relu'), fan_in = out_features * in_features
    fan_in = out_features * in_features
    std = np.sqrt(2.0 / fan_in)
    W = std * jax.random.normal(
        k_w, (in_features, out_features, in_features), jnp.float32)

    # --- inputs ---
    D = jax.random.normal(k_d, (batch, in_features), jnp.float32)

    out = gauss_duq_forward(D, W, m_buf, N_buf, gamma_val)
    out = jax.block_until_ready(out)

    ref = jax.block_until_ready(ref_forward(D, W, m_buf, N_buf, gamma_val))
    np.testing.assert_allclose(np.asarray(out), np.asarray(ref),
                               rtol=1e-4, atol=1e-5)

    print("KERNEL_OK")
</pallas_src>

<mosaic_0001>
module attributes {stable_mosaic.version = 11 : i64} {
  func.func @duq_kernel(%arg0: memref<8x32xf32, #tpu.memory_space<vmem>>, %arg1: memref<32x512xf32, #tpu.memory_space<vmem>>, %arg2: memref<1x512xf32, #tpu.memory_space<vmem>>, %arg3: memref<512x16xf32, #tpu.memory_space<vmem>>, %arg4: memref<1xf32, #tpu.memory_space<smem>>, %arg5: memref<8x16xf32, #tpu.memory_space<vmem>>) attributes {dimension_semantics = [], scalar_prefetch = 0 : i64, scratch_operands = 0 : i64, tpu.core_type = #tpu.core_type<tc>} {
    %c0 = arith.constant 0 : index
    %c0_0 = arith.constant 0 : index
    %0 = vector.load %arg0[%c0, %c0_0] : memref<8x32xf32, #tpu.memory_space<vmem>>, vector<8x32xf32>
    %c0_1 = arith.constant 0 : index
    %c0_2 = arith.constant 0 : index
    %1 = vector.load %arg1[%c0_1, %c0_2] : memref<32x512xf32, #tpu.memory_space<vmem>>, vector<32x512xf32>
    %cst = arith.constant dense<0.000000e+00> : vector<8x512xf32>
    %2 = tpu.matmul %0, %1, %cst {dimension_numbers = #tpu.dot_dimension_numbers<[1], [0], [0], [1], [0, 0, 1, 1], [], []>} : vector<8x32xf32>, vector<32x512xf32>, vector<8x512xf32> -> vector<8x512xf32>
    %c0_3 = arith.constant 0 : index
    %c0_4 = arith.constant 0 : index
    %3 = vector.load %arg2[%c0_3, %c0_4] : memref<1x512xf32, #tpu.memory_space<vmem>>, vector<1x512xf32>
    %4 = vector.broadcast %3 : vector<1x512xf32> to vector<8x512xf32>
    %5 = arith.subf %2, %4 : vector<8x512xf32>
    %6 = arith.mulf %5, %5 : vector<8x512xf32>
    %c0_5 = arith.constant 0 : index
    %c0_6 = arith.constant 0 : index
    %7 = vector.load %arg3[%c0_5, %c0_6] : memref<512x16xf32, #tpu.memory_space<vmem>>, vector<512x16xf32>
    %cst_7 = arith.constant dense<0.000000e+00> : vector<8x16xf32>
    %8 = tpu.matmul %6, %7, %cst_7 {dimension_numbers = #tpu.dot_dimension_numbers<[1], [0], [0], [1], [0, 0, 1, 1], [], []>} : vector<8x512xf32>, vector<512x16xf32>, vector<8x16xf32> -> vector<8x16xf32>
    %c0_8 = arith.constant 0 : index
    %9 = memref.load %arg4[%c0_8] : memref<1xf32, #tpu.memory_space<smem>>
    %10 = vector.broadcast %9 : f32 to vector<8x16xf32>
    %11 = arith.mulf %10, %8 : vector<8x16xf32>
    %c0_9 = arith.constant 0 : index
    %c0_10 = arith.constant 0 : index
    %12 = vector.load %arg5[%c0_9, %c0_10] : memref<8x16xf32, #tpu.memory_space<vmem>>, vector<8x16xf32>
    tpu.vector_store %arg5[%c0_9, %c0_10], %11 {strides = array<i32>} : memref<8x16xf32, #tpu.memory_space<vmem>>, vector<8x16xf32>,
    return
  }
}

</mosaic_0001>

<llo_original>
// kernel: tpu_custom_call.1
$region0: #{tpu_custom_call.1}
  #allocation0 [shape = 'u32[]', space=smem, size = 0x4, offset = 0x4, fixed_abs, tag = 'smem constant byte address 0x4 - core index']
  #allocation1 [shape = 'u32[72,128]{1,0:T(1,128)}', space=vmem, size = 0x9000, scoped, tag = 'internal scratch']
  #allocation2 [shape = 'f32[1]{0:T(128)S(6)}', space=smem, size = 0x200, scoped, tag = 'scoped memory for tpu_custom_call.1']
  %s0 = inlined_call_operand.vmem [shape: f32[8,32], index: 0, kind: input, shape index: {}]
  %s1 = inlined_call_operand.vmem [shape: f32[32,512], index: 1, kind: input, shape index: {}]
  %s2 = inlined_call_operand.vmem [shape: f32[1,512], index: 2, kind: input, shape index: {}]
  %s3 = inlined_call_operand.vmem [shape: f32[512,16], index: 3, kind: input, shape index: {}]
  %s4 = inlined_call_operand.<no memory space> [shape: f32[1], index: 4, kind: input, shape index: {}]
  %s5 = inlined_call_operand.hbm [shape: f32[8,16], index: 5, kind: output, shape index: {}]
  %s6 = sld [smem:[#allocation0]]
  $region30: #{tpu_custom_call.1} parent=0
    _
  %s8 = ssub.s32 1, %s6
  %s9 = scalar_select 0, %s8, %s6
  %10 = sst [smem:[#allocation2]] %s4
  $region1: #{tpu_custom_call.1} parent=0
    #allocation3 [shape = 'u8[4096]{0}', space=vmem, size = 0x1000, scoped, tag = 'output window, operand 0, single buffered']
    #allocation4 [shape = 's32[1]{0}', space=sflag, size = 0x4, scoped, tag = 'scoped memory for tpu_custom_call.1']
    %11 = vsyncpa [#allocation4], 0
    // Predicated region
    $region2: #{tpu_custom_call.1} parent=1 // pred_check
      _
    $region3: #{tpu_custom_call.1} parent=1 // pred_check_branch
      %13 = sbr.rel (0) target = $region5
    $region4: #{tpu_custom_call.1} parent=1 // pred_region
      _
    $region5: #{tpu_custom_call.1} parent=1 // pred_fallthru
      _
    // Predicated region
    $region6: #{tpu_custom_call.1} parent=1 // pred_check
      _
    $region7: #{tpu_custom_call.1} parent=1 // pred_check_branch
      %15 = sbr.rel (0) target = $region9
    $region8: #{tpu_custom_call.1} parent=1 // pred_region
      _
    $region9: #{tpu_custom_call.1} parent=1 // pred_fallthru
      _
    // Predicated region
    $region10: #{tpu_custom_call.1} parent=1 // pred_check
      _
    $region11: #{tpu_custom_call.1} parent=1 // pred_check_branch
      %17 = sbr.rel (0) target = $region13
    $region12: #{tpu_custom_call.1} parent=1 // pred_region
      _
    $region13: #{tpu_custom_call.1} parent=1 // pred_fallthru
      _
    // Predicated region
    $region14: #{tpu_custom_call.1} parent=1 // pred_check
      _
    $region15: #{tpu_custom_call.1} parent=1 // pred_check_branch
      %19 = sbr.rel (0) target = $region17
    $region16: #{tpu_custom_call.1} parent=1 // pred_region
      _
    $region17: #{tpu_custom_call.1} parent=1 // pred_fallthru
      _
    // Predicated region
    $region18: #{tpu_custom_call.1} parent=1 // pred_check
      _
    $region19: #{tpu_custom_call.1} parent=1 // pred_check_branch
      %21 = sbr.rel (0) target = $region21
    $region20: #{tpu_custom_call.1} parent=1 // pred_region
      _
    $region21: #{tpu_custom_call.1} parent=1 // pred_fallthru
      _
    %v22 = vld [vmem:[%s0] sm:$0xff]
    %v23 = vld [vmem:[%s1] sm:$0xff]
    %v24 = vld [vmem:[%s1 + $0x8] sm:$0xff]
    %v25 = vld [vmem:[%s1 + $0x10] sm:$0xff]
    %v26 = vld [vmem:[%s1 + $0x18] sm:$0xff]
    %v27 = vld [vmem:[%s1 + $0x20] sm:$0xff]
    %v28 = vld [vmem:[%s1 + $0x28] sm:$0xff]
    %v29 = vld [vmem:[%s1 + $0x30] sm:$0xff]
    %v30 = vld [vmem:[%s1 + $0x38] sm:$0xff]
    %v31 = vld [vmem:[%s1 + $0x40] sm:$0xff]
    %v32 = vld [vmem:[%s1 + $0x48] sm:$0xff]
    %v33 = vld [vmem:[%s1 + $0x50] sm:$0xff]
    %v34 = vld [vmem:[%s1 + $0x58] sm:$0xff]
    %v35 = vld [vmem:[%s1 + $0x60] sm:$0xff]
    %v36 = vld [vmem:[%s1 + $0x68] sm:$0xff]
    %v37 = vld [vmem:[%s1 + $0x70] sm:$0xff]
    %v38 = vld [vmem:[%s1 + $0x78] sm:$0xff]
    %vm39 = vcmask 261120
    %v41 = vsel %vm39, %v22, 0
    %43 = vmatpush.msra.mxu0 0.0
    %44 = vmatpush.msra.mxu0 0.0
    %45 = vmatpush.msra.mxu0 0.0
    %46 = vmatpush.msra.mxu0 0.0
    %47 = vmatpush.msra.mxu0 0.0
    %48 = vmatpush.msra.mxu0 0.0
    %49 = vmatpush.msra.mxu0 0.0
    %50 = vmatpush.msra.mxu0 0.0
    %51 = vmatpush.msra.mxu0 0.0
    %52 = vmatpush.msra.mxu0 0.0
    %53 = vmatpush.msra.mxu0 0.0
    %54 = vmatpush.msra.mxu0 0.0
    %55 = vmatpush.msra.mxu0 %v35
    %56 = vmatpush.msra.mxu0 %v31
    %57 = vmatpush.msra.mxu0 %v27
    %58 = vmatpush.msra.mxu0 %v23
    %59 = vmatmul.f32.gmra.mxu0 %v41
    %v60 = vpop.f32.mrf.mxu0
    %v61 = vadd.f32 0.0, %v60
    %62 = vdwg.mxu0
    %63 = vmatpush.msra.mxu0 0.0
    %64 = vmatpush.msra.mxu0 0.0
    %65 = vmatpush.msra.mxu0 0.0
    %66 = vmatpush.msra.mxu0 0.0
    %67 = vmatpush.msra.mxu0 0.0
    %68 = vmatpush.msra.mxu0 0.0
    %69 = vmatpush.msra.mxu0 0.0
    %70 = vmatpush.msra.mxu0 0.0
    %71 = vmatpush.msra.mxu0 0.0
    %72 = vmatpush.msra.mxu0 0.0
    %73 = vmatpush.msra.mxu0 0.0
    %74 = vmatpush.msra.mxu0 0.0
    %75 = vmatpush.msra.mxu0 %v36
    %76 = vmatpush.msra.mxu0 %v32
    %77 = vmatpush.msra.mxu0 %v28
    %78 = vmatpush.msra.mxu0 %v24
    %79 = vmatmul.f32.gmra.mxu0 %v41
    %v80 = vpop.f32.mrf.mxu0
    %v81 = vadd.f32 0.0, %v80
    %82 = vdwg.mxu0
    %83 = vmatpush.msra.mxu0 0.0
    %84 = vmatpush.msra.mxu0 0.0
    %85 = vmatpush.msra.mxu0 0.0
    %86 = vmatpush.msra.mxu0 0.0
    %87 = vmatpush.msra.mxu0 0.0
    %88 = vmatpush.msra.mxu0 0.0
    %89 = vmatpush.msra.mxu0 0.0
    %90 = vmatpush.msra.mxu0 0.0
    %91 = vmatpush.msra.mxu0 0.0
    %92 = vmatpush.msra.mxu0 0.0
    %93 = vmatpush.msra.mxu0 0.0
    %94 = vmatpush.msra.mxu0 0.0
    %95 = vmatpush.msra.mxu0 %v37
    %96 = vmatpush.msra.mxu0 %v33
    %97 = vmatpush.msra.mxu0 %v29
    %98 = vmatpush.msra.mxu0 %v25
    %99 = vmatmul.f32.gmra.mxu0 %v41
    %v100 = vpop.f32.mrf.mxu0
    %v101 = vadd.f32 0.0, %v100
    %102 = vdwg.mxu0
    %103 = vmatpush.msra.mxu0 0.0
    %104 = vmatpush.msra.mxu0 0.0
    %105 = vmatpush.msra.mxu0 0.0
    %106 = vmatpush.msra.mxu0 0.0
    %107 = vmatpush.msra.mxu0 0.0
    %108 = vmatpush.msra.mxu0 0.0
    %109 = vmatpush.msra.mxu0 0.0
    %110 = vmatpush.msra.mxu0 0.0
    %111 = vmatpush.msra.mxu0 0.0
    %112 = vmatpush.msra.mxu0 0.0
    %113 = vmatpush.msra.mxu0 0.0
    %114 = vmatpush.msra.mxu0 0.0
    %115 = vmatpush.msra.mxu0 %v38
    %116 = vmatpush.msra.mxu0 %v34
    %117 = vmatpush.msra.mxu0 %v30
    %118 = vmatpush.msra.mxu0 %v26
    %119 = vmatmul.f32.gmra.mxu0 %v41
    %v120 = vpop.f32.mrf.mxu0
    %v121 = vadd.f32 0.0, %v120
    %122 = vdwg.mxu0
    %v123 = vld [vmem:[%s2] sm:$0xf]
    %v125 = vperm.slane %v123, 0
    %v126 = vperm.slane %v123, 1
    %v127 = vperm.slane %v123, 2
    %v128 = vperm.slane %v123, 3
    %v133 = vsub.f32 %v61, %v125
    %v134 = vsub.f32 %v81, %v126
    %v135 = vsub.f32 %v101, %v127
    %v136 = vsub.f32 %v121, %v128
    %v137 = vmul.f32 %v133, %v133
    %v138 = vmul.f32 %v134, %v134
    %v139 = vmul.f32 %v135, %v135
    %v140 = vmul.f32 %v136, %v136
    %v141 = vld [vmem:[%s3] sm:$0xff]
    %v142 = vld [vmem:[%s3 + $0x8] sm:$0xff]
    %v143 = vld [vmem:[%s3 + $0x10] sm:$0xff]
    %v144 = vld [vmem:[%s3 + $0x18] sm:$0xff]
    %v145 = vld [vmem:[%s3 + $0x20] sm:$0xff]
    %v146 = vld [vmem:[%s3 + $0x28] sm:$0xff]
    %v147 = vld [vmem:[%s3 + $0x30] sm:$0xff]
    %v148 = vld [vmem:[%s3 + $0x38] sm:$0xff]
    %v149 = vld [vmem:[%s3 + $0x40] sm:$0xff]
    %v150 = vld [vmem:[%s3 + $0x48] sm:$0xff]
    %v151 = vld [vmem:[%s3 + $0x50] sm:$0xff]
    %v152 = vld [vmem:[%s3 + $0x58] sm:$0xff]
    %v153 = vld [vmem:[%s3 + $0x60] sm:$0xff]
    %v154 = vld [vmem:[%s3 + $0x68] sm:$0xff]
    %v155 = vld [vmem:[%s3 + $0x70] sm:$0xff]
    %v156 = vld [vmem:[%s3 + $0x78] sm:$0xff]
    %v157 = vld [vmem:[%s3 + $0x80] sm:$0xff]
    %v158 = vld [vmem:[%s3 + $0x88] sm:$0xff]
    %v159 = vld [vmem:[%s3 + $0x90] sm:$0xff]
    %v160 = vld [vmem:[%s3 + $0x98] sm:$0xff]
    %v161 = vld [vmem:[%s3 + $0xa0] sm:$0xff]
    %v162 = vld [vmem:[%s3 + $0xa8] sm:$0xff]
    %v163 = vld [vmem:[%s3 + $0xb0] sm:$0xff]
    %v164 = vld [vmem:[%s3 + $0xb8] sm:$0xff]
    %v165 = vld [vmem:[%s3 + $0xc0] sm:$0xff]
    %v166 = vld [vmem:[%s3 + $0xc8] sm:$0xff]
    %v167 = vld [vmem:[%s3 + $0xd0] sm:$0xff]
    %v168 = vld [vmem:[%s3 + $0xd8] sm:$0xff]
    %v169 = vld [vmem:[%s3 + $0xe0] sm:$0xff]
    %v170 = vld [vmem:[%s3 + $0xe8] sm:$0xff]
    %v171 = vld [vmem:[%s3 + $0xf0] sm:$0xff]
    %v172 = vld [vmem:[%s3 + $0xf8] sm:$0xff]
    %v173 = vld [vmem:[%s3 + $0x100] sm:$0xff]
    %v174 = vld [vmem:[%s3 + $0x108] sm:$0xff]
    %v175 = vld [vmem:[%s3 + $0x110] sm:$0xff]
    %v176 = vld [vmem:[%s3 + $0x118] sm:$0xff]
    %v177 = vld [vmem:[%s3 + $0x120] sm:$0xff]
    %v178 = vld [vmem:[%s3 + $0x128] sm:$0xff]
    %v179 = vld [vmem:[%s3 + $0x130] sm:$0xff]
    %v180 = vld [vmem:[%s3 + $0x138] sm:$0xff]
    %v181 = vld [vmem:[%s3 + $0x140] sm:$0xff]
    %v182 = vld [vmem:[%s3 + $0x148] sm:$0xff]
    %v183 = vld [vmem:[%s3 + $0x150] sm:$0xff]
    %v184 = vld [vmem:[%s3 + $0x158] sm:$0xff]
    %v185 = vld [vmem:[%s3 + $0x160] sm:$0xff]
    %v186 = vld [vmem:[%s3 + $0x168] sm:$0xff]
    %v187 = vld [vmem:[%s3 + $0x170] sm:$0xff]
    %v188 = vld [vmem:[%s3 + $0x178] sm:$0xff]
    %v189 = vld [vmem:[%s3 + $0x180] sm:$0xff]
    %v190 = vld [vmem:[%s3 + $0x188] sm:$0xff]
    %v191 = vld [vmem:[%s3 + $0x190] sm:$0xff]
    %v192 = vld [vmem:[%s3 + $0x198] sm:$0xff]
    %v193 = vld [vmem:[%s3 + $0x1a0] sm:$0xff]
    %v194 = vld [vmem:[%s3 + $0x1a8] sm:$0xff]
    %v195 = vld [vmem:[%s3 + $0x1b0] sm:$0xff]
    %v196 = vld [vmem:[%s3 + $0x1b8] sm:$0xff]
    %v197 = vld [vmem:[%s3 + $0x1c0] sm:$0xff]
    %v198 = vld [vmem:[%s3 + $0x1c8] sm:$0xff]
    %v199 = vld [vmem:[%s3 + $0x1d0] sm:$0xff]
    %v200 = vld [vmem:[%s3 + $0x1d8] sm:$0xff]
    %v201 = vld [vmem:[%s3 + $0x1e0] sm:$0xff]
    %v202 = vld [vmem:[%s3 + $0x1e8] sm:$0xff]
    %v203 = vld [vmem:[%s3 + $0x1f0] sm:$0xff]
    %v204 = vld [vmem:[%s3 + $0x1f8] sm:$0xff]
    %205 = vmatpush.msra.mxu0 %v156
    %206 = vmatpush.msra.mxu0 %v155
    %207 = vmatpush.msra.mxu0 %v154
    %208 = vmatpush.msra.mxu0 %v153
    %209 = vmatpush.msra.mxu0 %v152
    %210 = vmatpush.msra.mxu0 %v151
    %211 = vmatpush.msra.mxu0 %v150
    %212 = vmatpush.msra.mxu0 %v149
    %213 = vmatpush.msra.mxu0 %v148
    %214 = vmatpush.msra.mxu0 %v147
    %215 = vmatpush.msra.mxu0 %v146
    %216 = vmatpush.msra.mxu0 %v145
    %217 = vmatpush.msra.mxu0 %v144
    %218 = vmatpush.msra.mxu0 %v143
    %219 = vmatpush.msra.mxu0 %v142
    %220 = vmatpush.msra.mxu0 %v141
    %221 = vmatmul.f32.gmra.mxu0 %v137
    %v222 = vpop.f32.mrf.mxu0
    %v223 = vadd.f32 0.0, %v222
    %224 = vdwg.mxu0
    %225 = vmatpush.msra.mxu0 %v172
    %226 = vmatpush.msra.mxu0 %v171
    %227 = vmatpush.msra.mxu0 %v170
    %228 = vmatpush.msra.mxu0 %v169
    %229 = vmatpush.msra.mxu0 %v168
    %230 = vmatpush.msra.mxu0 %v167
    %231 = vmatpush.msra.mxu0 %v166
    %232 = vmatpush.msra.mxu0 %v165
    %233 = vmatpush.msra.mxu0 %v164
    %234 = vmatpush.msra.mxu0 %v163
    %235 = vmatpush.msra.mxu0 %v162
    %236 = vmatpush.msra.mxu0 %v161
    %237 = vmatpush.msra.mxu0 %v160
    %238 = vmatpush.msra.mxu0 %v159
    %239 = vmatpush.msra.mxu0 %v158
    %240 = vmatpush.msra.mxu0 %v157
    %241 = vmatmul.f32.gmra.mxu0 %v138
    %v242 = vpop.f32.mrf.mxu0
    %v243 = vadd.f32 %v223, %v242
    %244 = vdwg.mxu0
    %245 = vmatpush.msra.mxu0 %v188
    %246 = vmatpush.msra.mxu0 %v187
    %247 = vmatpush.msra.mxu0 %v186
    %248 = vmatpush.msra.mxu0 %v185
    %249 = vmatpush.msra.mxu0 %v184
    %250 = vmatpush.msra.mxu0 %v183
    %251 = vmatpush.msra.mxu0 %v182
    %252 = vmatpush.msra.mxu0 %v181
    %253 = vmatpush.msra.mxu0 %v180
    %254 = vmatpush.msra.mxu0 %v179
    %255 = vmatpush.msra.mxu0 %v178
    %256 = vmatpush.msra.mxu0 %v177
    %257 = vmatpush.msra.mxu0 %v176
    %258 = vmatpush.msra.mxu0 %v175
    %259 = vmatpush.msra.mxu0 %v174
    %260 = vmatpush.msra.mxu0 %v173
    %261 = vmatmul.f32.gmra.mxu0 %v139
    %v262 = vpop.f32.mrf.mxu0
    %v263 = vadd.f32 %v243, %v262
    %264 = vdwg.mxu0
    %265 = vmatpush.msra.mxu0 %v204
    %266 = vmatpush.msra.mxu0 %v203
    %267 = vmatpush.msra.mxu0 %v202
    %268 = vmatpush.msra.mxu0 %v201
    %269 = vmatpush.msra.mxu0 %v200
    %270 = vmatpush.msra.mxu0 %v199
    %271 = vmatpush.msra.mxu0 %v198
    %272 = vmatpush.msra.mxu0 %v197
    %273 = vmatpush.msra.mxu0 %v196
    %274 = vmatpush.msra.mxu0 %v195
    %275 = vmatpush.msra.mxu0 %v194
    %276 = vmatpush.msra.mxu0 %v193
    %277 = vmatpush.msra.mxu0 %v192
    %278 = vmatpush.msra.mxu0 %v191
    %279 = vmatpush.msra.mxu0 %v190
    %280 = vmatpush.msra.mxu0 %v189
    %281 = vmatmul.f32.gmra.mxu0 %v140
    %v282 = vpop.f32.mrf.mxu0
    %v283 = vadd.f32 %v263, %v282
    %284 = vdwg.mxu0
    %s285 = sld [smem:[#allocation2]]
    %v286 = vstv %s285
    %v287 = vmul.f32 %v286, %v283
    %vm288 = vcmask 130048
    %289 = vst.msk [vmem:[#allocation3] sm:$0xff] %vm288, %v287
    // Predicated region
    $region22: #{tpu_custom_call.1} parent=1 // pred_check
      _
    $region23: #{tpu_custom_call.1} parent=1 // pred_check_branch
      %291 = sbr.rel (0) target = $region25
    $region24: #{tpu_custom_call.1} parent=1 // pred_region
      %293 = vsyncadd [#allocation4], 0
      %s295 = sshll.u32 [#allocation3], 4
      %s296 = int_to_ptr.vmem [resolvable:$true] %s295
      %s297 = sshll.u32 %s5, 4
      %s298 = int_to_ptr.hbm [resolvable:$true] %s297
      %300 = dma.vmem_to_hbm [thread:$0]  %s296, 128, %s298, [#allocation4]
    $region25: #{tpu_custom_call.1} parent=1 // pred_fallthru
      _
    // Predicated region
    $region26: #{tpu_custom_call.1} parent=1 // pred_check
      _
    $region27: #{tpu_custom_call.1} parent=1 // pred_check_branch
      %302 = sbr.rel (0) target = $region29
    $region28: #{tpu_custom_call.1} parent=1 // pred_region
      %304 = dma.done [#allocation4], 128
    $region29: #{tpu_custom_call.1} parent=1 // pred_fallthru
      _
    %305 = vsyncpa [#allocation4], 1

</llo_original>
